<compile_context>
chip_gen: v7x
topology: tpu7x:2x2x1
jax: 0.10.0
libtpu: 0.0.40
codegen_flags: <defaults>
</compile_context>

<pallas_src>
import jax
import jax.numpy as jnp
from jax.experimental import pallas as pl
from jax.experimental.pallas import tpu as pltpu

LEAKY_SLOPE = 0.01  # nn.LeakyReLU() default negative_slope


def _discriminator_kernel(x_ref,
                          w1_ref, b1_ref,
                          w2_ref, b2_ref,
                          w3_ref, b3_ref,
                          o_ref):
    """Fused 3-layer MLP forward for one (TM, in_features) batch tile."""

    def leaky_relu(v):
        # max(v, slope*v) == LeakyReLU for 0 < slope < 1 (mul+max on the VPU).
        return jnp.maximum(v, LEAKY_SLOPE * v)

    x = x_ref[...].astype(jnp.bfloat16)

    h = jnp.dot(x, w1_ref[...], preferred_element_type=jnp.float32) + b1_ref[...]
    h = leaky_relu(h)

    h = jnp.dot(h.astype(jnp.bfloat16), w2_ref[...],
                preferred_element_type=jnp.float32) + b2_ref[...]
    h = leaky_relu(h)

    logits = jnp.dot(h.astype(jnp.bfloat16), w3_ref[...],
                     preferred_element_type=jnp.float32) + b3_ref[...]
    o_ref[...] = jax.nn.sigmoid(logits).astype(o_ref.dtype)


def discriminator_forward(x, params, *, tm=512):
    """x: [batch, 4*input_length] float32. params: dict of bf16 weights / f32 biases."""
    w1, b1 = params["w1"], params["b1"]
    w2, b2 = params["w2"], params["b2"]
    w3, b3 = params["w3"], params["b3"]

    batch, in_features = x.shape
    out_dim = w3.shape[1]

    # Clamp the batch tile: multiple of 8 (f32 sublane), no larger than needed.
    tm = max(8, min(tm, ((batch + 7) // 8) * 8))
    grid = (pl.cdiv(batch, tm),)

    def resident(shape):
        # Weight / bias blocks: full array, same block every grid step -> stays in VMEM.
        return pl.BlockSpec(shape, lambda i: (0, 0))

    flops = 2 * batch * (in_features * 256 + 256 * 512 + 512 * out_dim)
    param_bytes = sum(int(p.size) * p.dtype.itemsize for p in params.values())
    bytes_accessed = (int(x.size) * x.dtype.itemsize
                      + batch * out_dim * 4
                      + param_bytes)
    cost = pl.CostEstimate(flops=flops,
                           transcendentals=batch * out_dim,   # sigmoid exp
                           bytes_accessed=bytes_accessed)

    return pl.pallas_call(
        _discriminator_kernel,
        out_shape=jax.ShapeDtypeStruct((batch, out_dim), jnp.float32),
        grid=grid,
        in_specs=[
            pl.BlockSpec((tm, in_features), lambda i: (i, 0)),   # x: batch-tiled
            resident(w1.shape), resident(b1.shape),
            resident(w2.shape), resident(b2.shape),
            resident(w3.shape), resident(b3.shape),
        ],
        out_specs=pl.BlockSpec((tm, out_dim), lambda i: (i, 0)),
        compiler_params=pltpu.CompilerParams(
            dimension_semantics=("parallel",)),
        cost_estimate=cost,
    )(x, w1, b1, w2, b2, w3, b3)


def init_discriminator_params(key, input_length):
    """PyTorch-Linear-style init (uniform +-1/sqrt(fan_in)).

    Weights stored as [in, out] (transpose of PyTorch [out, in]) in bf16;
    biases as (1, fan_out) f32."""
    dims = [(4 * input_length, 256), (256, 512), (512, input_length)]
    params = {}
    keys = jax.random.split(key, 2 * len(dims))
    for i, (fan_in, fan_out) in enumerate(dims):
        bound = 1.0 / (fan_in ** 0.5)
        w = jax.random.uniform(keys[2 * i], (fan_in, fan_out),
                               minval=-bound, maxval=bound, dtype=jnp.float32)
        b = jax.random.uniform(keys[2 * i + 1], (1, fan_out),
                               minval=-bound, maxval=bound, dtype=jnp.float32)
        params[f"w{i + 1}"] = w.astype(jnp.bfloat16)
        params[f"b{i + 1}"] = b
    return params


def reference_forward(x, params):
    """Pure-JAX reference of the same (bf16-input, f32-accum) forward pass."""
    def leaky(v):
        return jnp.maximum(v, LEAKY_SLOPE * v)
    h = leaky(jnp.dot(x.astype(jnp.bfloat16), params["w1"],
                      preferred_element_type=jnp.float32) + params["b1"])
    h = leaky(jnp.dot(h.astype(jnp.bfloat16), params["w2"],
                      preferred_element_type=jnp.float32) + params["b2"])
    return jax.nn.sigmoid(jnp.dot(h.astype(jnp.bfloat16), params["w3"],
                                  preferred_element_type=jnp.float32) + params["b3"])


if __name__ == "__main__":
    key = jax.random.PRNGKey(0)
    k_param, k_x = jax.random.split(key)

    input_length = 8                 # Discriminator(input_length=8)
    batch = 2
    in_features = 4 * input_length   # forward expects [batch, 4*input_length]

    params = init_discriminator_params(k_param, input_length)
    x = jax.random.normal(k_x, (batch, in_features), dtype=jnp.float32)

    out = discriminator_forward(x, params)
    out = jax.block_until_ready(out)

    ref = reference_forward(x, params)
    assert out.shape == (batch, input_length)
    assert jnp.allclose(out, ref, atol=1e-3, rtol=1e-3), "mismatch vs reference"

    print("KERNEL_OK")
</pallas_src>

<mosaic_0001>
module attributes {stable_mosaic.version = 11 : i64} {
  func.func @_discriminator_kernel(%arg0: i32, %arg1: memref<8x32xf32, #tpu.memory_space<vmem>>, %arg2: memref<32x256xbf16, #tpu.memory_space<vmem>>, %arg3: memref<1x256xf32, #tpu.memory_space<vmem>>, %arg4: memref<256x512xbf16, #tpu.memory_space<vmem>>, %arg5: memref<1x512xf32, #tpu.memory_space<vmem>>, %arg6: memref<512x8xbf16, #tpu.memory_space<vmem>>, %arg7: memref<1x8xf32, #tpu.memory_space<vmem>>, %arg8: memref<8x8xf32, #tpu.memory_space<vmem>>) attributes {dimension_semantics = [#tpu.dimension_semantics<parallel>], iteration_bounds = array<i64: 1>, scalar_prefetch = 0 : i64, scratch_operands = 0 : i64, tpu.core_type = #tpu.core_type<tc>, window_params = [{transform_indices = @transform_0, window_bounds = array<i64: 8, 32>}, {pipeline_mode = #tpu.pipeline_mode<synchronous>, transform_indices = @transform_1, window_bounds = array<i64: 32, 256>}, {pipeline_mode = #tpu.pipeline_mode<synchronous>, transform_indices = @transform_2, window_bounds = array<i64: 1, 256>}, {pipeline_mode = #tpu.pipeline_mode<synchronous>, transform_indices = @transform_3, window_bounds = array<i64: 256, 512>}, {pipeline_mode = #tpu.pipeline_mode<synchronous>, transform_indices = @transform_4, window_bounds = array<i64: 1, 512>}, {pipeline_mode = #tpu.pipeline_mode<synchronous>, transform_indices = @transform_5, window_bounds = array<i64: 512, 8>}, {pipeline_mode = #tpu.pipeline_mode<synchronous>, transform_indices = @transform_6, window_bounds = array<i64: 1, 8>}, {transform_indices = @transform_7, window_bounds = array<i64: 8, 8>}]} {
    %c0 = arith.constant 0 : index
    %c0_0 = arith.constant 0 : index
    %0 = vector.load %arg1[%c0, %c0_0] : memref<8x32xf32, #tpu.memory_space<vmem>>, vector<8x32xf32>
    %1 = arith.truncf %0 : vector<8x32xf32> to vector<8x32xbf16>
    %c0_1 = arith.constant 0 : index
    %c0_2 = arith.constant 0 : index
    %2 = vector.load %arg2[%c0_1, %c0_2] : memref<32x256xbf16, #tpu.memory_space<vmem>>, vector<32x256xbf16>
    %cst = arith.constant dense<0.000000e+00> : vector<8x256xf32>
    %3 = tpu.matmul %1, %2, %cst {dimension_numbers = #tpu.dot_dimension_numbers<[1], [0], [0], [1], [0, 0, 1, 1], [], []>} : vector<8x32xbf16>, vector<32x256xbf16>, vector<8x256xf32> -> vector<8x256xf32>
    %c0_3 = arith.constant 0 : index
    %c0_4 = arith.constant 0 : index
    %4 = vector.load %arg3[%c0_3, %c0_4] : memref<1x256xf32, #tpu.memory_space<vmem>>, vector<1x256xf32>
    %5 = vector.broadcast %4 : vector<1x256xf32> to vector<8x256xf32>
    %6 = arith.addf %3, %5 : vector<8x256xf32>
    %cst_5 = arith.constant 0.00999999977 : f32
    %7 = vector.broadcast %cst_5 : f32 to vector<8x256xf32>
    %8 = arith.mulf %7, %6 : vector<8x256xf32>
    %9 = arith.maximumf %6, %8 : vector<8x256xf32>
    %10 = arith.truncf %9 : vector<8x256xf32> to vector<8x256xbf16>
    %c0_6 = arith.constant 0 : index
    %c0_7 = arith.constant 0 : index
    %11 = vector.load %arg4[%c0_6, %c0_7] : memref<256x512xbf16, #tpu.memory_space<vmem>>, vector<256x512xbf16>
    %cst_8 = arith.constant dense<0.000000e+00> : vector<8x512xf32>
    %12 = tpu.matmul %10, %11, %cst_8 {dimension_numbers = #tpu.dot_dimension_numbers<[1], [0], [0], [1], [0, 0, 1, 1], [], []>} : vector<8x256xbf16>, vector<256x512xbf16>, vector<8x512xf32> -> vector<8x512xf32>
    %c0_9 = arith.constant 0 : index
    %c0_10 = arith.constant 0 : index
    %13 = vector.load %arg5[%c0_9, %c0_10] : memref<1x512xf32, #tpu.memory_space<vmem>>, vector<1x512xf32>
    %14 = vector.broadcast %13 : vector<1x512xf32> to vector<8x512xf32>
    %15 = arith.addf %12, %14 : vector<8x512xf32>
    %cst_11 = arith.constant 0.00999999977 : f32
    %16 = vector.broadcast %cst_11 : f32 to vector<8x512xf32>
    %17 = arith.mulf %16, %15 : vector<8x512xf32>
    %18 = arith.maximumf %15, %17 : vector<8x512xf32>
    %19 = arith.truncf %18 : vector<8x512xf32> to vector<8x512xbf16>
    %c0_12 = arith.constant 0 : index
    %c0_13 = arith.constant 0 : index
    %20 = vector.load %arg6[%c0_12, %c0_13] : memref<512x8xbf16, #tpu.memory_space<vmem>>, vector<512x8xbf16>
    %cst_14 = arith.constant dense<0.000000e+00> : vector<8x8xf32>
    %21 = tpu.matmul %19, %20, %cst_14 {dimension_numbers = #tpu.dot_dimension_numbers<[1], [0], [0], [1], [0, 0, 1, 1], [], []>} : vector<8x512xbf16>, vector<512x8xbf16>, vector<8x8xf32> -> vector<8x8xf32>
    %c0_15 = arith.constant 0 : index
    %c0_16 = arith.constant 0 : index
    %22 = vector.load %arg7[%c0_15, %c0_16] : memref<1x8xf32, #tpu.memory_space<vmem>>, vector<1x8xf32>
    %23 = vector.broadcast %22 : vector<1x8xf32> to vector<8x8xf32>
    %24 = arith.addf %21, %23 : vector<8x8xf32>
    %25 = arith.negf %24 : vector<8x8xf32>
    %26 = math.exp %25 : vector<8x8xf32>
    %cst_17 = arith.constant 1.000000e+00 : f32
    %27 = vector.broadcast %cst_17 : f32 to vector<8x8xf32>
    %28 = arith.addf %27, %26 : vector<8x8xf32>
    %29 = arith.divf %27, %28 : vector<8x8xf32>
    %c0_18 = arith.constant 0 : index
    %c0_19 = arith.constant 0 : index
    %30 = vector.load %arg8[%c0_18, %c0_19] : memref<8x8xf32, #tpu.memory_space<vmem>>, vector<8x8xf32>
    tpu.vector_store %arg8[%c0_18, %c0_19], %29 {strides = array<i32>} : memref<8x8xf32, #tpu.memory_space<vmem>>, vector<8x8xf32>,
    return
  }
  func.func @transform_0(%arg0: i32) -> (i32, i32) {
    %c0_i32 = arith.constant 0 : i32
    %c0_i32_0 = arith.constant 0 : i32
    return %arg0, %c0_i32 : i32, i32
  }
  func.func @transform_1(%arg0: i32) -> (i32, i32) {
    %c0_i32 = arith.constant 0 : i32
    %c0_i32_0 = arith.constant 0 : i32
    %c0_i32_1 = arith.constant 0 : i32
    return %c0_i32, %c0_i32_0 : i32, i32
  }
  func.func @transform_2(%arg0: i32) -> (i32, i32) {
    %c0_i32 = arith.constant 0 : i32
    %c0_i32_0 = arith.constant 0 : i32
    %c0_i32_1 = arith.constant 0 : i32
    return %c0_i32, %c0_i32_0 : i32, i32
  }
  func.func @transform_3(%arg0: i32) -> (i32, i32) {
    %c0_i32 = arith.constant 0 : i32
    %c0_i32_0 = arith.constant 0 : i32
    %c0_i32_1 = arith.constant 0 : i32
    return %c0_i32, %c0_i32_0 : i32, i32
  }
  func.func @transform_4(%arg0: i32) -> (i32, i32) {
    %c0_i32 = arith.constant 0 : i32
    %c0_i32_0 = arith.constant 0 : i32
    %c0_i32_1 = arith.constant 0 : i32
    return %c0_i32, %c0_i32_0 : i32, i32
  }
  func.func @transform_5(%arg0: i32) -> (i32, i32) {
    %c0_i32 = arith.constant 0 : i32
    %c0_i32_0 = arith.constant 0 : i32
    %c0_i32_1 = arith.constant 0 : i32
    return %c0_i32, %c0_i32_0 : i32, i32
  }
  func.func @transform_6(%arg0: i32) -> (i32, i32) {
    %c0_i32 = arith.constant 0 : i32
    %c0_i32_0 = arith.constant 0 : i32
    %c0_i32_1 = arith.constant 0 : i32
    return %c0_i32, %c0_i32_0 : i32, i32
  }
  func.func @transform_7(%arg0: i32) -> (i32, i32) {
    %c0_i32 = arith.constant 0 : i32
    %c0_i32_0 = arith.constant 0 : i32
    return %arg0, %c0_i32 : i32, i32
  }
}

</mosaic_0001>

<llo_original>
// kernel: tpu_custom_call.1
$region0: #{tpu_custom_call.1}
  #allocation0 [shape = 'u32[]', space=smem, size = 0x4, offset = 0x4, fixed_abs, tag = 'smem constant byte address 0x4 - core index']
  #allocation1 [shape = 'u32[144,128]{1,0:T(1,128)}', space=vmem, size = 0x12000, scoped, tag = 'internal scratch']
  %s0 = inlined_call_operand.vmem [shape: f32[2,32], index: 0, kind: input, shape index: {}]
  %s1 = inlined_call_operand.vmem [shape: bf16[32,256], index: 1, kind: input, shape index: {}]
  %s2 = inlined_call_operand.vmem [shape: f32[1,256], index: 2, kind: input, shape index: {}]
  %s3 = inlined_call_operand.hbm [shape: bf16[256,512], index: 3, kind: input, shape index: {}]
  %s4 = inlined_call_operand.vmem [shape: f32[1,512], index: 4, kind: input, shape index: {}]
  %s5 = inlined_call_operand.vmem [shape: bf16[512,8], index: 5, kind: input, shape index: {}]
  %s6 = inlined_call_operand.vmem [shape: f32[1,8], index: 6, kind: input, shape index: {}]
  %s7 = inlined_call_operand.hbm [shape: f32[2,8], index: 7, kind: output, shape index: {}]
  %s8 = sld [smem:[#allocation0]]
  $region42: #{tpu_custom_call.1} parent=0
    _
  %s10 = ssub.s32 1, %s8
  %s11 = scalar_select 0, %s10, %s8
  $region1: #{tpu_custom_call.1} parent=0
    #allocation2 [shape = 'u8[262144]{0}', space=vmem, size = 0x40000, scoped, tag = 'input window, operand 3, single buffered']
    #allocation3 [shape = 's32[1]{0}', space=sflag, size = 0x4, scoped, tag = 'scoped memory for tpu_custom_call.1']
    #allocation4 [shape = 's32[1]{0}', space=sflag, size = 0x4, scoped, tag = 'scoped memory for tpu_custom_call.1']
    #allocation5 [shape = 'u8[4096]{0}', space=vmem, size = 0x1000, scoped, tag = 'output window, operand 0, single buffered']
    %12 = vsyncpa [#allocation3], 0
    %13 = vsyncpa [#allocation4], 0
    // Predicated region
    $region2: #{tpu_custom_call.1} parent=1 // pred_check
      _
    $region3: #{tpu_custom_call.1} parent=1 // pred_check_branch
      %15 = sbr.rel (0) target = $region5
    $region4: #{tpu_custom_call.1} parent=1 // pred_region
      _
    $region5: #{tpu_custom_call.1} parent=1 // pred_fallthru
      _
    // Predicated region
    $region6: #{tpu_custom_call.1} parent=1 // pred_check
      _
    $region7: #{tpu_custom_call.1} parent=1 // pred_check_branch
      %17 = sbr.rel (0) target = $region9
    $region8: #{tpu_custom_call.1} parent=1 // pred_region
      _
    $region9: #{tpu_custom_call.1} parent=1 // pred_fallthru
      _
    // Predicated region
    $region10: #{tpu_custom_call.1} parent=1 // pred_check
      _
    $region11: #{tpu_custom_call.1} parent=1 // pred_check_branch
      %19 = sbr.rel (0) target = $region13
    $region12: #{tpu_custom_call.1} parent=1 // pred_region
      _
    $region13: #{tpu_custom_call.1} parent=1 // pred_fallthru
      _
    // Predicated region
    $region14: #{tpu_custom_call.1} parent=1 // pred_check
      _
    $region15: #{tpu_custom_call.1} parent=1 // pred_check_branch
      %21 = sbr.rel (0) target = $region17
    $region16: #{tpu_custom_call.1} parent=1 // pred_region
      %s23 = ssub.s32 8192, 8192
      %24 = vsyncadd [#allocation3], %s23
      %s25 = sshll.u32 [#allocation2], 4
      %s26 = int_to_ptr.vmem [resolvable:$true] %s25
      %31 = dma.hbm_to_vmem [thread:$0]  %s3, 8192, %s26, [#allocation3], 256, 256, 16
    $region17: #{tpu_custom_call.1} parent=1 // pred_fallthru
      _
    // Predicated region
    $region18: #{tpu_custom_call.1} parent=1 // pred_check
      _
    $region19: #{tpu_custom_call.1} parent=1 // pred_check_branch
      %33 = sbr.rel (0) target = $region21
    $region20: #{tpu_custom_call.1} parent=1 // pred_region
      _
    $region21: #{tpu_custom_call.1} parent=1 // pred_fallthru
      _
    // Predicated region
    $region22: #{tpu_custom_call.1} parent=1 // pred_check
      _
    $region23: #{tpu_custom_call.1} parent=1 // pred_check_branch
      %35 = sbr.rel (0) target = $region25
    $region24: #{tpu_custom_call.1} parent=1 // pred_region
      _
    $region25: #{tpu_custom_call.1} parent=1 // pred_fallthru
      _
    // Predicated region
    $region26: #{tpu_custom_call.1} parent=1 // pred_check
      _
    $region27: #{tpu_custom_call.1} parent=1 // pred_check_branch
      %37 = sbr.rel (0) target = $region29
    $region28: #{tpu_custom_call.1} parent=1 // pred_region
      _
    $region29: #{tpu_custom_call.1} parent=1 // pred_fallthru
      _
    // Predicated region
    $region30: #{tpu_custom_call.1} parent=1 // pred_check
      _
    $region31: #{tpu_custom_call.1} parent=1 // pred_check_branch
      %39 = sbr.rel (0) target = $region33
    $region32: #{tpu_custom_call.1} parent=1 // pred_region
      %40 = dma.done [#allocation3], 8192
    $region33: #{tpu_custom_call.1} parent=1 // pred_fallthru
      _
    %v42 = vld [vmem:[%s0] sm:$0xff]
    %v43 = vpack.c.bf16 %v42, %v42
    %v44 = vld [vmem:[%s1] sm:$0xff]
    %v45 = vld [vmem:[%s1 + $0x8] sm:$0xff]
    %v46 = vld [vmem:[%s1 + $0x10] sm:$0xff]
    %v47 = vld [vmem:[%s1 + $0x18] sm:$0xff]
    %v48 = vld [vmem:[%s2] sm:$0x3]
    %v50 = vlaneseq
    %v51 = vshrl.u32 %v50, 7
    %v52 = vsub.s32 0, %v51
    %v53 = vrot.slane %v48, %v52
    %v54 = vlaneseq
    %v55 = vshrl.u32 %v54, 7
    %v56 = vsub.s32 1, %v55
    %v57 = vrot.slane %v48, %v56
    %v64 = vunpack.c.l.b16 %v44
    %v65 = vunpack.c.h.b16 %v44
    %v66 = vunpack.c.l.b16 %v45
    %v67 = vunpack.c.h.b16 %v45
    %v68 = vunpack.c.l.b16 %v46
    %v69 = vunpack.c.h.b16 %v46
    %v70 = vunpack.c.l.b16 %v47
    %v71 = vunpack.c.h.b16 %v47
    %v72 = vpack.c.b16 %v66, %v64
    %v73 = vpack.c.b16 %v67, %v65
    %v74 = vpack.c.b16 %v70, %v68
    %v75 = vpack.c.b16 %v71, %v69
    %vm80 = vcmask 261120
    %v82 = vsel %vm80, %v43, 0
    %84 = vmatprep.subr.bf16.mxu0 %v73
    %85 = vmatpush1.bf16.msra.mxu0 %v72
    %86 = vmatprep.subr.bf16.mxu0 %v75
    %87 = vmatpush1.bf16.msra.mxu0 %v74
    %88 = vmatprep.subr.bf16.mxu0 0
    %89 = vmatpush1.bf16.msra.mxu0 0
    %90 = vmatprep.subr.bf16.mxu0 0
    %91 = vmatpush1.bf16.msra.mxu0 0
    %92 = vmatprep.subr.bf16.mxu0 0
    %93 = vmatpush1.bf16.msra.mxu0 0
    %94 = vmatprep.subr.bf16.mxu0 0
    %95 = vmatpush1.bf16.msra.mxu0 0
    %96 = vmatprep.subr.bf16.mxu0 0
    %97 = vmatpush1.bf16.msra.mxu0 0
    %98 = vmatprep.subr.bf16.mxu0 0
    %99 = vmatpush1.bf16.msra.mxu0 0
    %100 = vmatprep.subr.bf16.mxu0 0
    %101 = vmatpush1.bf16.msra.mxu0 0
    %102 = vmatprep.subr.bf16.mxu0 0
    %103 = vmatpush1.bf16.msra.mxu0 0
    %104 = vmatprep.subr.bf16.mxu0 0
    %105 = vmatpush1.bf16.msra.mxu0 0
    %106 = vmatprep.subr.bf16.mxu0 0
    %107 = vmatpush1.bf16.msra.mxu0 0
    %108 = vmatprep.subr.bf16.mxu0 0
    %109 = vmatpush1.bf16.msra.mxu0 0
    %110 = vmatprep.subr.bf16.mxu0 0
    %111 = vmatpush1.bf16.msra.mxu0 0
    %112 = vmatprep.subr.bf16.mxu0 0
    %113 = vmatpush1.bf16.msra.mxu0 0
    %114 = vmatprep.subr.bf16.mxu0 0
    %115 = vmatpush1.bf16.msra.mxu0 0
    %116 = vmatprep.mubr.bf16.mxu0 0
    %117 = vmatmul.mubr.bf16.gmra.mrb[0].mxu0 %v82
    %v118 = vpop.f32.mrb[0].mxu0
    %v119 = vadd.f32 %v53, %v118
    %v120 = vpop.f32.mrb[0].mxu0
    %v121 = vadd.f32 %v57, %v120
    %v122 = vpop.f32.mrb[0].mxu0
    %v123 = vpop.f32.mrb[0].mxu0
    %124 = vdwg.mxu0
    %v125 = vmul.f32 %v119, 0.01
    %v126 = vmul.f32 %v121, 0.01
    %v127 = vmax.f32 %v119, %v125
    %v128 = vmax.f32 %v121, %v126
    %v129 = vpack.c.bf16 %v127, %v127
    %v130 = vpack.c.bf16 %v128, %v128
    %v131 = vld [vmem:[#allocation2] sm:$0xff]
    %v132 = vld [vmem:[#allocation2 + $0x8] sm:$0xff]
    %v133 = vld [vmem:[#allocation2 + $0x10] sm:$0xff]
    %v134 = vld [vmem:[#allocation2 + $0x18] sm:$0xff]
    %v135 = vld [vmem:[#allocation2 + $0x20] sm:$0xff]
    %v136 = vld [vmem:[#allocation2 + $0x28] sm:$0xff]
    %v137 = vld [vmem:[#allocation2 + $0x30] sm:$0xff]
    %v138 = vld [vmem:[#allocation2 + $0x38] sm:$0xff]
    %v139 = vld [vmem:[#allocation2 + $0x40] sm:$0xff]
    %v140 = vld [vmem:[#allocation2 + $0x48] sm:$0xff]
    %v141 = vld [vmem:[#allocation2 + $0x50] sm:$0xff]
    %v142 = vld [vmem:[#allocation2 + $0x58] sm:$0xff]
    %v143 = vld [vmem:[#allocation2 + $0x60] sm:$0xff]
    %v144 = vld [vmem:[#allocation2 + $0x68] sm:$0xff]
    %v145 = vld [vmem:[#allocation2 + $0x70] sm:$0xff]
    %v146 = vld [vmem:[#allocation2 + $0x78] sm:$0xff]
    %v147 = vld [vmem:[#allocation2 + $0x80] sm:$0xff]
    %v148 = vld [vmem:[#allocation2 + $0x88] sm:$0xff]
    %v149 = vld [vmem:[#allocation2 + $0x90] sm:$0xff]
    %v150 = vld [vmem:[#allocation2 + $0x98] sm:$0xff]
    %v151 = vld [vmem:[#allocation2 + $0xa0] sm:$0xff]
    %v152 = vld [vmem:[#allocation2 + $0xa8] sm:$0xff]
    %v153 = vld [vmem:[#allocation2 + $0xb0] sm:$0xff]
    %v154 = vld [vmem:[#allocation2 + $0xb8] sm:$0xff]
    %v155 = vld [vmem:[#allocation2 + $0xc0] sm:$0xff]
    %v156 = vld [vmem:[#allocation2 + $0xc8] sm:$0xff]
    %v157 = vld [vmem:[#allocation2 + $0xd0] sm:$0xff]
    %v158 = vld [vmem:[#allocation2 + $0xd8] sm:$0xff]
    %v159 = vld [vmem:[#allocation2 + $0xe0] sm:$0xff]
    %v160 = vld [vmem:[#allocation2 + $0xe8] sm:$0xff]
    %v161 = vld [vmem:[#allocation2 + $0xf0] sm:$0xff]
    %v162 = vld [vmem:[#allocation2 + $0xf8] sm:$0xff]
    %v163 = vld [vmem:[#allocation2 + $0x100] sm:$0xff]
    %v164 = vld [vmem:[#allocation2 + $0x108] sm:$0xff]
    %v165 = vld [vmem:[#allocation2 + $0x110] sm:$0xff]
    %v166 = vld [vmem:[#allocation2 + $0x118] sm:$0xff]
    %v167 = vld [vmem:[#allocation2 + $0x120] sm:$0xff]
    %v168 = vld [vmem:[#allocation2 + $0x128] sm:$0xff]
    %v169 = vld [vmem:[#allocation2 + $0x130] sm:$0xff]
    %v170 = vld [vmem:[#allocation2 + $0x138] sm:$0xff]
    %v171 = vld [vmem:[#allocation2 + $0x140] sm:$0xff]
    %v172 = vld [vmem:[#allocation2 + $0x148] sm:$0xff]
    %v173 = vld [vmem:[#allocation2 + $0x150] sm:$0xff]
    %v174 = vld [vmem:[#allocation2 + $0x158] sm:$0xff]
    %v175 = vld [vmem:[#allocation2 + $0x160] sm:$0xff]
    %v176 = vld [vmem:[#allocation2 + $0x168] sm:$0xff]
    %v177 = vld [vmem:[#allocation2 + $0x170] sm:$0xff]
    %v178 = vld [vmem:[#allocation2 + $0x178] sm:$0xff]
    %v179 = vld [vmem:[#allocation2 + $0x180] sm:$0xff]
    %v180 = vld [vmem:[#allocation2 + $0x188] sm:$0xff]
    %v181 = vld [vmem:[#allocation2 + $0x190] sm:$0xff]
    %v182 = vld [vmem:[#allocation2 + $0x198] sm:$0xff]
    %v183 = vld [vmem:[#allocation2 + $0x1a0] sm:$0xff]
    %v184 = vld [vmem:[#allocation2 + $0x1a8] sm:$0xff]
    %v185 = vld [vmem:[#allocation2 + $0x1b0] sm:$0xff]
    %v186 = vld [vmem:[#allocation2 + $0x1b8] sm:$0xff]
    %v187 = vld [vmem:[#allocation2 + $0x1c0] sm:$0xff]
    %v188 = vld [vmem:[#allocation2 + $0x1c8] sm:$0xff]
    %v189 = vld [vmem:[#allocation2 + $0x1d0] sm:$0xff]
    %v190 = vld [vmem:[#allocation2 + $0x1d8] sm:$0xff]
    %v191 = vld [vmem:[#allocation2 + $0x1e0] sm:$0xff]
    %v192 = vld [vmem:[#allocation2 + $0x1e8] sm:$0xff]
    %v193 = vld [vmem:[#allocation2 + $0x1f0] sm:$0xff]
    %v194 = vld [vmem:[#allocation2 + $0x1f8] sm:$0xff]
    %v195 = vld [vmem:[%s4] sm:$0xf]
    %v197 = vlaneseq
    %v198 = vshrl.u32 %v197, 7
    %v199 = vsub.s32 0, %v198
    %v200 = vrot.slane %v195, %v199
    %v201 = vlaneseq
    %v202 = vshrl.u32 %v201, 7
    %v203 = vsub.s32 1, %v202
    %v204 = vrot.slane %v195, %v203
    %v205 = vlaneseq
    %v206 = vshrl.u32 %v205, 7
    %v207 = vsub.s32 2, %v206
    %v208 = vrot.slane %v195, %v207
    %v209 = vlaneseq
    %v210 = vshrl.u32 %v209, 7
    %v211 = vsub.s32 3, %v210
    %v212 = vrot.slane %v195, %v211
    %v281 = vunpack.c.l.b16 %v131
    %v282 = vunpack.c.h.b16 %v131
    %v283 = vunpack.c.l.b16 %v132
    %v284 = vunpack.c.h.b16 %v132
    %v285 = vunpack.c.l.b16 %v133
    %v286 = vunpack.c.h.b16 %v133
    %v287 = vunpack.c.l.b16 %v134
    %v288 = vunpack.c.h.b16 %v134
    %v289 = vunpack.c.l.b16 %v135
    %v290 = vunpack.c.h.b16 %v135
    %v291 = vunpack.c.l.b16 %v136
    %v292 = vunpack.c.h.b16 %v136
    %v293 = vunpack.c.l.b16 %v137
    %v294 = vunpack.c.h.b16 %v137
    %v295 = vunpack.c.l.b16 %v138
    %v296 = vunpack.c.h.b16 %v138
    %v297 = vunpack.c.l.b16 %v139
    %v298 = vunpack.c.h.b16 %v139
    %v299 = vunpack.c.l.b16 %v140
    %v300 = vunpack.c.h.b16 %v140
    %v301 = vunpack.c.l.b16 %v141
    %v302 = vunpack.c.h.b16 %v141
    %v303 = vunpack.c.l.b16 %v142
    %v304 = vunpack.c.h.b16 %v142
    %v305 = vunpack.c.l.b16 %v143
    %v306 = vunpack.c.h.b16 %v143
    %v307 = vunpack.c.l.b16 %v144
    %v308 = vunpack.c.h.b16 %v144
    %v309 = vunpack.c.l.b16 %v145
    %v310 = vunpack.c.h.b16 %v145
    %v311 = vunpack.c.l.b16 %v146
    %v312 = vunpack.c.h.b16 %v146
    %v313 = vunpack.c.l.b16 %v147
    %v314 = vunpack.c.h.b16 %v147
    %v315 = vunpack.c.l.b16 %v148
    %v316 = vunpack.c.h.b16 %v148
    %v317 = vunpack.c.l.b16 %v149
    %v318 = vunpack.c.h.b16 %v149
    %v319 = vunpack.c.l.b16 %v150
    %v320 = vunpack.c.h.b16 %v150
    %v321 = vunpack.c.l.b16 %v151
    %v322 = vunpack.c.h.b16 %v151
    %v323 = vunpack.c.l.b16 %v152
    %v324 = vunpack.c.h.b16 %v152
    %v325 = vunpack.c.l.b16 %v153
    %v326 = vunpack.c.h.b16 %v153
    %v327 = vunpack.c.l.b16 %v154
    %v328 = vunpack.c.h.b16 %v154
    %v329 = vunpack.c.l.b16 %v155
    %v330 = vunpack.c.h.b16 %v155
    %v331 = vunpack.c.l.b16 %v156
    %v332 = vunpack.c.h.b16 %v156
    %v333 = vunpack.c.l.b16 %v157
    %v334 = vunpack.c.h.b16 %v157
    %v335 = vunpack.c.l.b16 %v158
    %v336 = vunpack.c.h.b16 %v158
    %v337 = vunpack.c.l.b16 %v159
    %v338 = vunpack.c.h.b16 %v159
    %v339 = vunpack.c.l.b16 %v160
    %v340 = vunpack.c.h.b16 %v160
    %v341 = vunpack.c.l.b16 %v161
    %v342 = vunpack.c.h.b16 %v161
    %v343 = vunpack.c.l.b16 %v162
    %v344 = vunpack.c.h.b16 %v162
    %v345 = vunpack.c.l.b16 %v163
    %v346 = vunpack.c.h.b16 %v163
    %v347 = vunpack.c.l.b16 %v164
    %v348 = vunpack.c.h.b16 %v164
    %v349 = vunpack.c.l.b16 %v165
    %v350 = vunpack.c.h.b16 %v165
    %v351 = vunpack.c.l.b16 %v166
    %v352 = vunpack.c.h.b16 %v166
    %v353 = vunpack.c.l.b16 %v167
    %v354 = vunpack.c.h.b16 %v167
    %v355 = vunpack.c.l.b16 %v168
    %v356 = vunpack.c.h.b16 %v168
    %v357 = vunpack.c.l.b16 %v169
    %v358 = vunpack.c.h.b16 %v169
    %v359 = vunpack.c.l.b16 %v170
    %v360 = vunpack.c.h.b16 %v170
    %v361 = vunpack.c.l.b16 %v171
    %v362 = vunpack.c.h.b16 %v171
    %v363 = vunpack.c.l.b16 %v172
    %v364 = vunpack.c.h.b16 %v172
    %v365 = vunpack.c.l.b16 %v173
    %v366 = vunpack.c.h.b16 %v173
    %v367 = vunpack.c.l.b16 %v174
    %v368 = vunpack.c.h.b16 %v174
    %v369 = vunpack.c.l.b16 %v175
    %v370 = vunpack.c.h.b16 %v175
    %v371 = vunpack.c.l.b16 %v176
    %v372 = vunpack.c.h.b16 %v176
    %v373 = vunpack.c.l.b16 %v177
    %v374 = vunpack.c.h.b16 %v177
    %v375 = vunpack.c.l.b16 %v178
    %v376 = vunpack.c.h.b16 %v178
    %v377 = vunpack.c.l.b16 %v179
    %v378 = vunpack.c.h.b16 %v179
    %v379 = vunpack.c.l.b16 %v180
    %v380 = vunpack.c.h.b16 %v180
    %v381 = vunpack.c.l.b16 %v181
    %v382 = vunpack.c.h.b16 %v181
    %v383 = vunpack.c.l.b16 %v182
    %v384 = vunpack.c.h.b16 %v182
    %v385 = vunpack.c.l.b16 %v183
    %v386 = vunpack.c.h.b16 %v183
    %v387 = vunpack.c.l.b16 %v184
    %v388 = vunpack.c.h.b16 %v184
    %v389 = vunpack.c.l.b16 %v185
    %v390 = vunpack.c.h.b16 %v185
    %v391 = vunpack.c.l.b16 %v186
    %v392 = vunpack.c.h.b16 %v186
    %v393 = vunpack.c.l.b16 %v187
    %v394 = vunpack.c.h.b16 %v187
    %v395 = vunpack.c.l.b16 %v188
    %v396 = vunpack.c.h.b16 %v188
    %v397 = vunpack.c.l.b16 %v189
    %v398 = vunpack.c.h.b16 %v189
    %v399 = vunpack.c.l.b16 %v190
    %v400 = vunpack.c.h.b16 %v190
    %v401 = vunpack.c.l.b16 %v191
    %v402 = vunpack.c.h.b16 %v191
    %v403 = vunpack.c.l.b16 %v192
    %v404 = vunpack.c.h.b16 %v192
    %v405 = vunpack.c.l.b16 %v193
    %v406 = vunpack.c.h.b16 %v193
    %v407 = vunpack.c.l.b16 %v194
    %v408 = vunpack.c.h.b16 %v194
    %v409 = vpack.c.b16 %v285, %v281
    %v410 = vpack.c.b16 %v286, %v282
    %v411 = vpack.c.b16 %v287, %v283
    %v412 = vpack.c.b16 %v288, %v284
    %v413 = vpack.c.b16 %v293, %v289
    %v414 = vpack.c.b16 %v294, %v290
    %v415 = vpack.c.b16 %v295, %v291
    %v416 = vpack.c.b16 %v296, %v292
    %v417 = vpack.c.b16 %v301, %v297
    %v418 = vpack.c.b16 %v302, %v298
    %v419 = vpack.c.b16 %v303, %v299
    %v420 = vpack.c.b16 %v304, %v300
    %v421 = vpack.c.b16 %v309, %v305
    %v422 = vpack.c.b16 %v310, %v306
    %v423 = vpack.c.b16 %v311, %v307
    %v424 = vpack.c.b16 %v312, %v308
    %v425 = vpack.c.b16 %v317, %v313
    %v426 = vpack.c.b16 %v318, %v314
    %v427 = vpack.c.b16 %v319, %v315
    %v428 = vpack.c.b16 %v320, %v316
    %v429 = vpack.c.b16 %v325, %v321
    %v430 = vpack.c.b16 %v326, %v322
    %v431 = vpack.c.b16 %v327, %v323
    %v432 = vpack.c.b16 %v328, %v324
    %v433 = vpack.c.b16 %v333, %v329
    %v434 = vpack.c.b16 %v334, %v330
    %v435 = vpack.c.b16 %v335, %v331
    %v436 = vpack.c.b16 %v336, %v332
    %v437 = vpack.c.b16 %v341, %v337
    %v438 = vpack.c.b16 %v342, %v338
    %v439 = vpack.c.b16 %v343, %v339
    %v440 = vpack.c.b16 %v344, %v340
    %v441 = vpack.c.b16 %v349, %v345
    %v442 = vpack.c.b16 %v350, %v346
    %v443 = vpack.c.b16 %v351, %v347
    %v444 = vpack.c.b16 %v352, %v348
    %v445 = vpack.c.b16 %v357, %v353
    %v446 = vpack.c.b16 %v358, %v354
    %v447 = vpack.c.b16 %v359, %v355
    %v448 = vpack.c.b16 %v360, %v356
    %v449 = vpack.c.b16 %v365, %v361
    %v450 = vpack.c.b16 %v366, %v362
    %v451 = vpack.c.b16 %v367, %v363
    %v452 = vpack.c.b16 %v368, %v364
    %v453 = vpack.c.b16 %v373, %v369
    %v454 = vpack.c.b16 %v374, %v370
    %v455 = vpack.c.b16 %v375, %v371
    %v456 = vpack.c.b16 %v376, %v372
    %v457 = vpack.c.b16 %v381, %v377
    %v458 = vpack.c.b16 %v382, %v378
    %v459 = vpack.c.b16 %v383, %v379
    %v460 = vpack.c.b16 %v384, %v380
    %v461 = vpack.c.b16 %v389, %v385
    %v462 = vpack.c.b16 %v390, %v386
    %v463 = vpack.c.b16 %v391, %v387
    %v464 = vpack.c.b16 %v392, %v388
    %v465 = vpack.c.b16 %v397, %v393
    %v466 = vpack.c.b16 %v398, %v394
    %v467 = vpack.c.b16 %v399, %v395
    %v468 = vpack.c.b16 %v400, %v396
    %v469 = vpack.c.b16 %v405, %v401
    %v470 = vpack.c.b16 %v406, %v402
    %v471 = vpack.c.b16 %v407, %v403
    %v472 = vpack.c.b16 %v408, %v404
    %537 = vmatprep.subr.bf16.mxu0 %v410
    %538 = vmatpush1.bf16.msra.mxu0 %v409
    %539 = vmatprep.subr.bf16.mxu0 %v414
    %540 = vmatpush1.bf16.msra.mxu0 %v413
    %541 = vmatprep.subr.bf16.mxu0 %v418
    %542 = vmatpush1.bf16.msra.mxu0 %v417
    %543 = vmatprep.subr.bf16.mxu0 %v422
    %544 = vmatpush1.bf16.msra.mxu0 %v421
    %545 = vmatprep.subr.bf16.mxu0 %v426
    %546 = vmatpush1.bf16.msra.mxu0 %v425
    %547 = vmatprep.subr.bf16.mxu0 %v430
    %548 = vmatpush1.bf16.msra.mxu0 %v429
    %549 = vmatprep.subr.bf16.mxu0 %v434
    %550 = vmatpush1.bf16.msra.mxu0 %v433
    %551 = vmatprep.subr.bf16.mxu0 %v438
    %552 = vmatpush1.bf16.msra.mxu0 %v437
    %553 = vmatprep.subr.bf16.mxu0 %v442
    %554 = vmatpush1.bf16.msra.mxu0 %v441
    %555 = vmatprep.subr.bf16.mxu0 %v446
    %556 = vmatpush1.bf16.msra.mxu0 %v445
    %557 = vmatprep.subr.bf16.mxu0 %v450
    %558 = vmatpush1.bf16.msra.mxu0 %v449
    %559 = vmatprep.subr.bf16.mxu0 %v454
    %560 = vmatpush1.bf16.msra.mxu0 %v453
    %561 = vmatprep.subr.bf16.mxu0 %v458
    %562 = vmatpush1.bf16.msra.mxu0 %v457
    %563 = vmatprep.subr.bf16.mxu0 %v462
    %564 = vmatpush1.bf16.msra.mxu0 %v461
    %565 = vmatprep.subr.bf16.mxu0 %v466
    %566 = vmatpush1.bf16.msra.mxu0 %v465
    %567 = vmatprep.subr.bf16.mxu0 %v470
    %568 = vmatpush1.bf16.msra.mxu0 %v469
    %569 = vmatprep.mubr.bf16.mxu0 %v130
    %570 = vmatmul.mubr.bf16.gmra.mrb[0].mxu0 %v129
    %v571 = vpop.f32.mrb[0].mxu0
    %v572 = vadd.f32 %v200, %v571
    %v573 = vpop.f32.mrb[0].mxu0
    %v574 = vadd.f32 %v204, %v573
    %v575 = vpop.f32.mrb[0].mxu0
    %v576 = vpop.f32.mrb[0].mxu0
    %577 = vdwg.mxu0
    %578 = vmatprep.subr.bf16.mxu0 %v412
    %579 = vmatpush1.bf16.msra.mxu0 %v411
    %580 = vmatprep.subr.bf16.mxu0 %v416
    %581 = vmatpush1.bf16.msra.mxu0 %v415
    %582 = vmatprep.subr.bf16.mxu0 %v420
    %583 = vmatpush1.bf16.msra.mxu0 %v419
    %584 = vmatprep.subr.bf16.mxu0 %v424
    %585 = vmatpush1.bf16.msra.mxu0 %v423
    %586 = vmatprep.subr.bf16.mxu0 %v428
    %587 = vmatpush1.bf16.msra.mxu0 %v427
    %588 = vmatprep.subr.bf16.mxu0 %v432
    %589 = vmatpush1.bf16.msra.mxu0 %v431
    %590 = vmatprep.subr.bf16.mxu0 %v436
    %591 = vmatpush1.bf16.msra.mxu0 %v435
    %592 = vmatprep.subr.bf16.mxu0 %v440
    %593 = vmatpush1.bf16.msra.mxu0 %v439
    %594 = vmatprep.subr.bf16.mxu0 %v444
    %595 = vmatpush1.bf16.msra.mxu0 %v443
    %596 = vmatprep.subr.bf16.mxu0 %v448
    %597 = vmatpush1.bf16.msra.mxu0 %v447
    %598 = vmatprep.subr.bf16.mxu0 %v452
    %599 = vmatpush1.bf16.msra.mxu0 %v451
    %600 = vmatprep.subr.bf16.mxu0 %v456
    %601 = vmatpush1.bf16.msra.mxu0 %v455
    %602 = vmatprep.subr.bf16.mxu0 %v460
    %603 = vmatpush1.bf16.msra.mxu0 %v459
    %604 = vmatprep.subr.bf16.mxu0 %v464
    %605 = vmatpush1.bf16.msra.mxu0 %v463
    %606 = vmatprep.subr.bf16.mxu0 %v468
    %607 = vmatpush1.bf16.msra.mxu0 %v467
    %608 = vmatprep.subr.bf16.mxu0 %v472
    %609 = vmatpush1.bf16.msra.mxu0 %v471
    %610 = vmatprep.mubr.bf16.mxu0 %v130
    %611 = vmatmul.mubr.bf16.gmra.mrb[0].mxu0 %v129
    %v612 = vpop.f32.mrb[0].mxu0
    %v613 = vadd.f32 %v208, %v612
    %v614 = vpop.f32.mrb[0].mxu0
    %v615 = vadd.f32 %v212, %v614
    %v616 = vpop.f32.mrb[0].mxu0
    %v617 = vpop.f32.mrb[0].mxu0
    %618 = vdwg.mxu0
    %v619 = vmul.f32 %v572, 0.01
    %v620 = vmul.f32 %v574, 0.01
    %v621 = vmul.f32 %v613, 0.01
    %v622 = vmul.f32 %v615, 0.01
    %v623 = vmax.f32 %v572, %v619
    %v624 = vmax.f32 %v574, %v620
    %v625 = vmax.f32 %v613, %v621
    %v626 = vmax.f32 %v615, %v622
    %v627 = vpack.c.bf16 %v623, %v623
    %v628 = vpack.c.bf16 %v624, %v624
    %v629 = vpack.c.bf16 %v625, %v625
    %v630 = vpack.c.bf16 %v626, %v626
    %v631 = vld [vmem:[%s5] sm:$0xf]
    %v632 = vld [vmem:[%s5 + $0x4] sm:$0xf]
    %v633 = vld [vmem:[%s5 + $0x8] sm:$0xf]
    %v634 = vld [vmem:[%s5 + $0xc] sm:$0xf]
    %v635 = vld [vmem:[%s5 + $0x10] sm:$0xf]
    %v636 = vld [vmem:[%s5 + $0x14] sm:$0xf]
    %v637 = vld [vmem:[%s5 + $0x18] sm:$0xf]
    %v638 = vld [vmem:[%s5 + $0x1c] sm:$0xf]
    %v639 = vld [vmem:[%s5 + $0x20] sm:$0xf]
    %v640 = vld [vmem:[%s5 + $0x24] sm:$0xf]
    %v641 = vld [vmem:[%s5 + $0x28] sm:$0xf]
    %v642 = vld [vmem:[%s5 + $0x2c] sm:$0xf]
    %v643 = vld [vmem:[%s5 + $0x30] sm:$0xf]
    %v644 = vld [vmem:[%s5 + $0x34] sm:$0xf]
    %v645 = vld [vmem:[%s5 + $0x38] sm:$0xf]
    %v646 = vld [vmem:[%s5 + $0x3c] sm:$0xf]
    %v647 = vld [vmem:[%s5 + $0x40] sm:$0xf]
    %v648 = vld [vmem:[%s5 + $0x44] sm:$0xf]
    %v649 = vld [vmem:[%s5 + $0x48] sm:$0xf]
    %v650 = vld [vmem:[%s5 + $0x4c] sm:$0xf]
    %v651 = vld [vmem:[%s5 + $0x50] sm:$0xf]
    %v652 = vld [vmem:[%s5 + $0x54] sm:$0xf]
    %v653 = vld [vmem:[%s5 + $0x58] sm:$0xf]
    %v654 = vld [vmem:[%s5 + $0x5c] sm:$0xf]
    %v655 = vld [vmem:[%s5 + $0x60] sm:$0xf]
    %v656 = vld [vmem:[%s5 + $0x64] sm:$0xf]
    %v657 = vld [vmem:[%s5 + $0x68] sm:$0xf]
    %v658 = vld [vmem:[%s5 + $0x6c] sm:$0xf]
    %v659 = vld [vmem:[%s5 + $0x70] sm:$0xf]
    %v660 = vld [vmem:[%s5 + $0x74] sm:$0xf]
    %v661 = vld [vmem:[%s5 + $0x78] sm:$0xf]
    %v662 = vld [vmem:[%s5 + $0x7c] sm:$0xf]
    %v663 = vld [vmem:[%s5 + $0x80] sm:$0xf]
    %v664 = vld [vmem:[%s5 + $0x84] sm:$0xf]
    %v665 = vld [vmem:[%s5 + $0x88] sm:$0xf]
    %v666 = vld [vmem:[%s5 + $0x8c] sm:$0xf]
    %v667 = vld [vmem:[%s5 + $0x90] sm:$0xf]
    %v668 = vld [vmem:[%s5 + $0x94] sm:$0xf]
    %v669 = vld [vmem:[%s5 + $0x98] sm:$0xf]
    %v670 = vld [vmem:[%s5 + $0x9c] sm:$0xf]
    %v671 = vld [vmem:[%s5 + $0xa0] sm:$0xf]
    %v672 = vld [vmem:[%s5 + $0xa4] sm:$0xf]
    %v673 = vld [vmem:[%s5 + $0xa8] sm:$0xf]
    %v674 = vld [vmem:[%s5 + $0xac] sm:$0xf]
    %v675 = vld [vmem:[%s5 + $0xb0] sm:$0xf]
    %v676 = vld [vmem:[%s5 + $0xb4] sm:$0xf]
    %v677 = vld [vmem:[%s5 + $0xb8] sm:$0xf]
    %v678 = vld [vmem:[%s5 + $0xbc] sm:$0xf]
    %v679 = vld [vmem:[%s5 + $0xc0] sm:$0xf]
    %v680 = vld [vmem:[%s5 + $0xc4] sm:$0xf]
    %v681 = vld [vmem:[%s5 + $0xc8] sm:$0xf]
    %v682 = vld [vmem:[%s5 + $0xcc] sm:$0xf]
    %v683 = vld [vmem:[%s5 + $0xd0] sm:$0xf]
    %v684 = vld [vmem:[%s5 + $0xd4] sm:$0xf]
    %v685 = vld [vmem:[%s5 + $0xd8] sm:$0xf]
    %v686 = vld [vmem:[%s5 + $0xdc] sm:$0xf]
    %v687 = vld [vmem:[%s5 + $0xe0] sm:$0xf]
    %v688 = vld [vmem:[%s5 + $0xe4] sm:$0xf]
    %v689 = vld [vmem:[%s5 + $0xe8] sm:$0xf]
    %v690 = vld [vmem:[%s5 + $0xec] sm:$0xf]
    %v691 = vld [vmem:[%s5 + $0xf0] sm:$0xf]
    %v692 = vld [vmem:[%s5 + $0xf4] sm:$0xf]
    %v693 = vld [vmem:[%s5 + $0xf8] sm:$0xf]
    %v694 = vld [vmem:[%s5 + $0xfc] sm:$0xf]
    %v695 = vld [vmem:[%s6] sm:$0x1]
    %v697 = vlaneseq
    %v698 = vshrl.u32 %v697, 7
    %v699 = vsub.s32 0, %v698
    %v700 = vrot.slane %v695, %v699
    %v766 = vunpack.c.l.b16 %v631
    %v767 = vunpack.c.l.b16 %v632
    %v768 = vunpack.c.l.b16 %v633
    %v769 = vunpack.c.l.b16 %v634
    %v770 = vunpack.c.l.b16 %v635
    %v771 = vunpack.c.l.b16 %v636
    %v772 = vunpack.c.l.b16 %v637
    %v773 = vunpack.c.l.b16 %v638
    %v774 = vunpack.c.l.b16 %v639
    %v775 = vunpack.c.l.b16 %v640
    %v776 = vunpack.c.l.b16 %v641
    %v777 = vunpack.c.l.b16 %v642
    %v778 = vunpack.c.l.b16 %v643
    %v779 = vunpack.c.l.b16 %v644
    %v780 = vunpack.c.l.b16 %v645
    %v781 = vunpack.c.l.b16 %v646
    %v782 = vunpack.c.l.b16 %v647
    %v783 = vunpack.c.l.b16 %v648
    %v784 = vunpack.c.l.b16 %v649
    %v785 = vunpack.c.l.b16 %v650
    %v786 = vunpack.c.l.b16 %v651
    %v787 = vunpack.c.l.b16 %v652
    %v788 = vunpack.c.l.b16 %v653
    %v789 = vunpack.c.l.b16 %v654
    %v790 = vunpack.c.l.b16 %v655
    %v791 = vunpack.c.l.b16 %v656
    %v792 = vunpack.c.l.b16 %v657
    %v793 = vunpack.c.l.b16 %v658
    %v794 = vunpack.c.l.b16 %v659
    %v795 = vunpack.c.l.b16 %v660
    %v796 = vunpack.c.l.b16 %v661
    %v797 = vunpack.c.l.b16 %v662
    %v798 = vunpack.c.l.b16 %v663
    %v799 = vunpack.c.l.b16 %v664
    %v800 = vunpack.c.l.b16 %v665
    %v801 = vunpack.c.l.b16 %v666
    %v802 = vunpack.c.l.b16 %v667
    %v803 = vunpack.c.l.b16 %v668
    %v804 = vunpack.c.l.b16 %v669
    %v805 = vunpack.c.l.b16 %v670
    %v806 = vunpack.c.l.b16 %v671
    %v807 = vunpack.c.l.b16 %v672
    %v808 = vunpack.c.l.b16 %v673
    %v809 = vunpack.c.l.b16 %v674
    %v810 = vunpack.c.l.b16 %v675
    %v811 = vunpack.c.l.b16 %v676
    %v812 = vunpack.c.l.b16 %v677
    %v813 = vunpack.c.l.b16 %v678
    %v814 = vunpack.c.l.b16 %v679
    %v815 = vunpack.c.l.b16 %v680
    %v816 = vunpack.c.l.b16 %v681
    %v817 = vunpack.c.l.b16 %v682
    %v818 = vunpack.c.l.b16 %v683
    %v819 = vunpack.c.l.b16 %v684
    %v820 = vunpack.c.l.b16 %v685
    %v821 = vunpack.c.l.b16 %v686
    %v822 = vunpack.c.l.b16 %v687
    %v823 = vunpack.c.l.b16 %v688
    %v824 = vunpack.c.l.b16 %v689
    %v825 = vunpack.c.l.b16 %v690
    %v826 = vunpack.c.l.b16 %v691
    %v827 = vunpack.c.l.b16 %v692
    %v828 = vunpack.c.l.b16 %v693
    %v829 = vunpack.c.l.b16 %v694
    %v830 = vpack.c.b16 %v767, %v766
    %v831 = vpack.c.b16 %v769, %v768
    %v832 = vpack.c.b16 %v771, %v770
    %v833 = vpack.c.b16 %v773, %v772
    %v834 = vpack.c.b16 %v775, %v774
    %v835 = vpack.c.b16 %v777, %v776
    %v836 = vpack.c.b16 %v779, %v778
    %v837 = vpack.c.b16 %v781, %v780
    %v838 = vpack.c.b16 %v783, %v782
    %v839 = vpack.c.b16 %v785, %v784
    %v840 = vpack.c.b16 %v787, %v786
    %v841 = vpack.c.b16 %v789, %v788
    %v842 = vpack.c.b16 %v791, %v790
    %v843 = vpack.c.b16 %v793, %v792
    %v844 = vpack.c.b16 %v795, %v794
    %v845 = vpack.c.b16 %v797, %v796
    %v846 = vpack.c.b16 %v799, %v798
    %v847 = vpack.c.b16 %v801, %v800
    %v848 = vpack.c.b16 %v803, %v802
    %v849 = vpack.c.b16 %v805, %v804
    %v850 = vpack.c.b16 %v807, %v806
    %v851 = vpack.c.b16 %v809, %v808
    %v852 = vpack.c.b16 %v811, %v810
    %v853 = vpack.c.b16 %v813, %v812
    %v854 = vpack.c.b16 %v815, %v814
    %v855 = vpack.c.b16 %v817, %v816
    %v856 = vpack.c.b16 %v819, %v818
    %v857 = vpack.c.b16 %v821, %v820
    %v858 = vpack.c.b16 %v823, %v822
    %v859 = vpack.c.b16 %v825, %v824
    %v860 = vpack.c.b16 %v827, %v826
    %v861 = vpack.c.b16 %v829, %v828
    %894 = vmatprep.subr.bf16.mxu0 0
    %895 = vmatpush1.bf16.msra.mxu0 %v830
    %896 = vmatprep.subr.bf16.mxu0 0
    %897 = vmatpush1.bf16.msra.mxu0 %v831
    %898 = vmatprep.subr.bf16.mxu0 0
    %899 = vmatpush1.bf16.msra.mxu0 %v832
    %900 = vmatprep.subr.bf16.mxu0 0
    %901 = vmatpush1.bf16.msra.mxu0 %v833
    %902 = vmatprep.subr.bf16.mxu0 0
    %903 = vmatpush1.bf16.msra.mxu0 %v834
    %904 = vmatprep.subr.bf16.mxu0 0
    %905 = vmatpush1.bf16.msra.mxu0 %v835
    %906 = vmatprep.subr.bf16.mxu0 0
    %907 = vmatpush1.bf16.msra.mxu0 %v836
    %908 = vmatprep.subr.bf16.mxu0 0
    %909 = vmatpush1.bf16.msra.mxu0 %v837
    %910 = vmatprep.subr.bf16.mxu0 0
    %911 = vmatpush1.bf16.msra.mxu0 %v838
    %912 = vmatprep.subr.bf16.mxu0 0
    %913 = vmatpush1.bf16.msra.mxu0 %v839
    %914 = vmatprep.subr.bf16.mxu0 0
    %915 = vmatpush1.bf16.msra.mxu0 %v840
    %916 = vmatprep.subr.bf16.mxu0 0
    %917 = vmatpush1.bf16.msra.mxu0 %v841
    %918 = vmatprep.subr.bf16.mxu0 0
    %919 = vmatpush1.bf16.msra.mxu0 %v842
    %920 = vmatprep.subr.bf16.mxu0 0
    %921 = vmatpush1.bf16.msra.mxu0 %v843
    %922 = vmatprep.subr.bf16.mxu0 0
    %923 = vmatpush1.bf16.msra.mxu0 %v844
    %924 = vmatprep.subr.bf16.mxu0 0
    %925 = vmatpush1.bf16.msra.mxu0 %v845
    %926 = vmatprep.mubr.bf16.mxu0 %v628
    %927 = vmatmul.mubr.bf16.gmra.mrb[0].mxu0 %v627
    %v928 = vpop.f32.mrb[0].mxu0
    %v929 = vadd.f32 %v700, %v928
    %v930 = vpop.f32.mrb[0].mxu0
    %v931 = vpop.f32.mrb[0].mxu0
    %v932 = vpop.f32.mrb[0].mxu0
    %933 = vdwg.mxu0
    %934 = vmatprep.subr.bf16.mxu0 0
    %935 = vmatpush1.bf16.msra.mxu0 %v846
    %936 = vmatprep.subr.bf16.mxu0 0
    %937 = vmatpush1.bf16.msra.mxu0 %v847
    %938 = vmatprep.subr.bf16.mxu0 0
    %939 = vmatpush1.bf16.msra.mxu0 %v848
    %940 = vmatprep.subr.bf16.mxu0 0
    %941 = vmatpush1.bf16.msra.mxu0 %v849
    %942 = vmatprep.subr.bf16.mxu0 0
    %943 = vmatpush1.bf16.msra.mxu0 %v850
    %944 = vmatprep.subr.bf16.mxu0 0
    %945 = vmatpush1.bf16.msra.mxu0 %v851
    %946 = vmatprep.subr.bf16.mxu0 0
    %947 = vmatpush1.bf16.msra.mxu0 %v852
    %948 = vmatprep.subr.bf16.mxu0 0
    %949 = vmatpush1.bf16.msra.mxu0 %v853
    %950 = vmatprep.subr.bf16.mxu0 0
    %951 = vmatpush1.bf16.msra.mxu0 %v854
    %952 = vmatprep.subr.bf16.mxu0 0
    %953 = vmatpush1.bf16.msra.mxu0 %v855
    %954 = vmatprep.subr.bf16.mxu0 0
    %955 = vmatpush1.bf16.msra.mxu0 %v856
    %956 = vmatprep.subr.bf16.mxu0 0
    %957 = vmatpush1.bf16.msra.mxu0 %v857
    %958 = vmatprep.subr.bf16.mxu0 0
    %959 = vmatpush1.bf16.msra.mxu0 %v858
    %960 = vmatprep.subr.bf16.mxu0 0
    %961 = vmatpush1.bf16.msra.mxu0 %v859
    %962 = vmatprep.subr.bf16.mxu0 0
    %963 = vmatpush1.bf16.msra.mxu0 %v860
    %964 = vmatprep.subr.bf16.mxu0 0
    %965 = vmatpush1.bf16.msra.mxu0 %v861
    %966 = vmatprep.mubr.bf16.mxu0 %v630
    %967 = vmatmul.mubr.bf16.gmra.mrb[0].mxu0 %v629
    %v968 = vpop.f32.mrb[0].mxu0
    %v969 = vadd.f32 %v929, %v968
    %v970 = vpop.f32.mrb[0].mxu0
    %v971 = vpop.f32.mrb[0].mxu0
    %v972 = vpop.f32.mrb[0].mxu0
    %973 = vdwg.mxu0
    %v974 = vxor.u32 %v969, 2147483648
    %v975 = vmul.f32 %v974, 1.442695
    %v976 = vpow.pop %v975
    %v977 = vadd.f32 %v976, 1.0
    %v978 = vrcp.pop %v977
    %v979 = vmul.f32 1.0, %v978
    %vm980 = vcmask 64512
    %981 = vst.msk [vmem:[#allocation5] sm:$0xff] %vm980, %v979
    // Predicated region
    $region34: #{tpu_custom_call.1} parent=1 // pred_check
      _
    $region35: #{tpu_custom_call.1} parent=1 // pred_check_branch
      %983 = sbr.rel (0) target = $region37
    $region36: #{tpu_custom_call.1} parent=1 // pred_region
      %s985 = ssub.s32 128, 32
      %986 = vsyncadd [#allocation4], %s985
      %s987 = sshll.u32 [#allocation5], 4
      %s988 = int_to_ptr.vmem [resolvable:$true] %s987
      %993 = dma.vmem_to_hbm [thread:$0]  %s988, 32, %s7, [#allocation4], 32, 32, 2
    $region37: #{tpu_custom_call.1} parent=1 // pred_fallthru
      _
    // Predicated region
    $region38: #{tpu_custom_call.1} parent=1 // pred_check
      _
    $region39: #{tpu_custom_call.1} parent=1 // pred_check_branch
      %995 = sbr.rel (0) target = $region41
    $region40: #{tpu_custom_call.1} parent=1 // pred_region
      %996 = dma.done [#allocation4], 128
    $region41: #{tpu_custom_call.1} parent=1 // pred_fallthru
      _
    %997 = vsyncpa [#allocation3], 1
    %998 = vsyncpa [#allocation4], 1

</llo_original>
